<compile_context>
chip_gen: v6e
topology: v6e:2x2x1
jax: 0.10.0
libtpu: 0.0.40
codegen_flags: <defaults>
</compile_context>

<pallas_src>
import functools

import jax
import jax.numpy as jnp
from jax import lax
from jax.experimental import pallas as pl
from jax.experimental.pallas import tpu as pltpu

_INV_SQRT2 = 0.7071067811865476  # 1 / sqrt(2)


def _round_up(x: int, m: int) -> int:
    return (x + m - 1) // m * m


def _device_defaults():
    """Per-TPU-generation tiling / VMEM defaults (conservative fallback)."""
    kind = ""
    try:
        dev = jax.devices()[0]
        if dev.platform == "tpu":
            kind = dev.device_kind.lower()
    except Exception:  # defensive: never fail just because of the query
        pass
    if "v7" in kind:
        # 64 MiB VMEM / TensorCore, 2 TCs per chip: smaller row tile, keep the
        # scoped limit below physical, and make sure grid >= 2 (megacore).
        return dict(block_m=512, block_m_f32=256, vmem_limit=56 * 1024 * 1024,
                    two_core=True, bf16_vpu=True)
    if "v6" in kind:
        # 128 MiB VMEM: bigger tiles amortize the ~0.35us/step pipeline cost.
        return dict(block_m=1024, block_m_f32=512, vmem_limit=96 * 1024 * 1024,
                    two_core=False, bf16_vpu=True)
    # v5e / older / unknown: 128 MiB VMEM, no bf16 VPU/EUP -> f32 epilogue.
    return dict(block_m=1024, block_m_f32=512, vmem_limit=96 * 1024 * 1024,
                two_core=False, bf16_vpu=False)


def _resident_spec(shape):
    """BlockSpec for a tensor that stays resident across the whole grid.

    Single-buffered (pl.Buffered(1)) when supported: the index_map is constant,
    so double-buffering would only waste a second 8-16 MiB VMEM copy of the
    weight at BERT-large sizes (matters most under v7x's 64 MiB VMEM).
    """
    index_map = lambda i: (0, 0)
    if hasattr(pl, "Buffered"):
        try:
            return pl.BlockSpec(shape, index_map, pipeline_mode=pl.Buffered(1))
        except Exception:  # older BlockSpec without pipeline_mode support
            pass
    return pl.BlockSpec(shape, index_map)


def _erf(z):
    """erf via Abramowitz & Stegun 7.1.26 (max abs error ~1.5e-7).

    One EUP exp + a 5-term Horner polynomial, so most of the GELU epilogue
    rides the otherwise-idle EUP slot instead of a long VALU-only erf
    expansion (and it avoids depending on an erf primitive lowering).
    Dtype-preserving: runs in bf16 on the bf16 epilogue path, f32 otherwise.
    """
    az = jnp.abs(z)
    t = 1.0 / (1.0 + 0.3275911 * az)
    poly = ((((1.061405429 * t - 1.453152027) * t + 1.421413741) * t
             - 0.284496736) * t + 0.254829592) * t
    res = 1.0 - poly * jnp.exp(-az * az)
    return jnp.where(z < 0, -res, res)


def _bert_intermediate_kernel(x_ref, w_ref, b_ref, o_ref, *, compute_dtype,
                              precision, act_dtype):
    # x_ref: (TM, H), w_ref: (H, I), b_ref: (1, I), o_ref: (TM, I)
    # In-kernel cast of the activation tile -> no extra HBM pass in the wrapper.
    x = x_ref[...].astype(compute_dtype)
    w = w_ref[...]                       # already compute_dtype (cast once outside)
    # Dense: y = x @ W + b, accumulated in f32 on the MXU.
    y = jnp.dot(x, w, preferred_element_type=jnp.float32, precision=precision)
    y = y + b_ref[...].astype(jnp.float32)
    # Exact (erf-based) GELU matching torch.nn.GELU() default; bf16 epilogue on
    # v6e/v7x bf16 paths, f32 elsewhere.
    h = y.astype(act_dtype)
    g = 0.5 * h * (1.0 + _erf(h * _INV_SQRT2))
    o_ref[...] = g.astype(o_ref.dtype)


def bert_intermediate(hidden_states, weight, bias, *,
                      operand_dtype=jnp.bfloat16, out_dtype=None,
                      block_m=None, gelu_in_bf16=None):
    """BertIntermediate forward: GELU(hidden_states @ weight + bias).

    hidden_states: (B, S, H); weight: (H, I) (i.e. torch `linear.weight.T`);
    bias: (I,). Returns (B, S, I).

    operand_dtype: MXU operand dtype. Default bf16 (f32 accumulation) - the
      fast path on every TPU generation. Pass jnp.float32 for an exact path;
      it runs the MXU with precision=HIGHEST (multi-pass fp32) at ~3-6x the
      cost of the bf16 path.
    out_dtype: output dtype (default: input dtype). Pass bf16 for bf16 models
      to halve output HBM writeback and out-tile VMEM.
    """
    B, S, H = hidden_states.shape
    Hw, I = weight.shape
    assert Hw == H, (Hw, H)
    out_dtype = jnp.dtype(out_dtype) if out_dtype is not None else hidden_states.dtype
    operand_dtype = jnp.dtype(operand_dtype)
    use_bf16 = operand_dtype == jnp.dtype(jnp.bfloat16)

    cfg = _device_defaults()
    if block_m is None:
        block_m = cfg["block_m"] if use_bf16 else cfg["block_m_f32"]
    block_m = max(8, _round_up(block_m, 8))
    if gelu_in_bf16 is None:
        gelu_in_bf16 = use_bf16 and cfg["bf16_vpu"]

    M = B * S
    x2d = hidden_states.reshape(M, H)   # NOT cast here: x tile is cast in-kernel
    b2d = bias.reshape(1, I)

    # Resident weight: cast once (cheap vs. the streamed activations; callers
    # that already hold bf16 params skip this entirely).
    w2d = weight if weight.dtype == operand_dtype else weight.astype(operand_dtype)

    # Lane-dense output: pad I to a multiple of 128 (no-op at real BERT sizes).
    i_pad = _round_up(I, 128)
    if i_pad != I:
        w2d = jnp.pad(w2d, ((0, 0), (0, i_pad - I)))
        b2d = jnp.pad(b2d, ((0, 0), (0, i_pad - I)))

    # Row tile: multiple of 8 sublanes. No wrapper-side padding of M - Pallas
    # masks the ragged last block, so odd B*S costs no extra HBM pass over x.
    tm = min(block_m, _round_up(M, 8))
    if cfg["two_core"] and 8 < M <= tm:
        # Ensure >= 2 grid steps so the "parallel" M axis uses both TCs (v7x).
        tm = max(8, _round_up(pl.cdiv(M, 2), 8))
    grid = (pl.cdiv(M, tm),)

    precision = None if use_bf16 else lax.Precision.HIGHEST
    act_dtype = jnp.bfloat16 if gelu_in_bf16 else jnp.float32

    kernel = functools.partial(
        _bert_intermediate_kernel,
        compute_dtype=operand_dtype, precision=precision, act_dtype=act_dtype)

    cost = pl.CostEstimate(
        flops=2 * M * H * i_pad,
        transcendentals=M * i_pad,  # one EUP exp per output element
        bytes_accessed=(x2d.size * x2d.dtype.itemsize
                        + w2d.size * w2d.dtype.itemsize
                        + b2d.size * b2d.dtype.itemsize
                        + M * i_pad * out_dtype.itemsize),
    )

    out2d = pl.pallas_call(
        kernel,
        out_shape=jax.ShapeDtypeStruct((M, i_pad), out_dtype),
        grid_spec=pl.GridSpec(
            grid=grid,
            in_specs=[
                pl.BlockSpec((tm, H), lambda i: (i, 0)),   # x: streamed over M
                _resident_spec((H, i_pad)),                # W: resident, 1 buffer
                _resident_spec((1, i_pad)),                # bias: resident
            ],
            out_specs=pl.BlockSpec((tm, i_pad), lambda i: (i, 0)),
        ),
        compiler_params=pltpu.CompilerParams(
            dimension_semantics=("parallel",),
            vmem_limit_bytes=cfg["vmem_limit"],
        ),
        cost_estimate=cost,
    )(x2d, w2d, b2d)

    if i_pad != I:
        out2d = out2d[:, :I]
    return out2d.reshape(B, S, I)


if __name__ == "__main__":
    # Small config consistent with the module: hidden=32, intermediate=64.
    batch, seq, hidden, intermediate = 2, 8, 32, 64

    key = jax.random.PRNGKey(0)
    k_x, k_w, k_b = jax.random.split(key, 3)
    x = jax.random.normal(k_x, (batch, seq, hidden), dtype=jnp.float32)
    # Deterministic synthetic "Linear" params (weight already (H, I) = W.T).
    w = jax.random.normal(k_w, (hidden, intermediate), dtype=jnp.float32) * 0.02
    b = jax.random.normal(k_b, (intermediate,), dtype=jnp.float32) * 0.02

    # Pure-JAX reference: exact (erf) GELU, matching torch.nn.GELU() default.
    ref = x @ w + b
    ref = 0.5 * ref * (1.0 + lax.erf(ref * _INV_SQRT2))

    # Default fast path: bf16 MXU operands (x cast in-kernel), f32 accumulation.
    out = bert_intermediate(x, w, b)
    jax.block_until_ready(out)
    assert out.shape == (batch, seq, intermediate)
    assert out.dtype == x.dtype
    err = float(jnp.max(jnp.abs(out - ref)))
    assert err < 2e-2, f"bf16-path max abs error {err}"

    # Exact f32-operand path (MXU precision=HIGHEST). Optional extra check:
    # skipped gracefully if fp32 contract precision is unsupported on this
    # jax/libtpu stack; the default path above is always asserted.
    try:
        out_f32 = bert_intermediate(x, w, b, operand_dtype=jnp.float32)
    except (NotImplementedError, pltpu.LoweringException,
            jax.errors.JaxRuntimeError):
        out_f32 = None  # TODO(synk): precision=HIGHEST unsupported on this stack.
    if out_f32 is not None:
        jax.block_until_ready(out_f32)
        err32 = float(jnp.max(jnp.abs(out_f32 - ref)))
        assert err32 < 3e-3, f"f32-path max abs error {err32}"

    print("KERNEL_OK")
</pallas_src>

<mosaic_0001>
module attributes {stable_mosaic.version = 11 : i64} {
  func.func @_bert_intermediate_kernel(%arg0: i32, %arg1: memref<16x32xf32, #tpu.memory_space<vmem>>, %arg2: memref<32x128xbf16, #tpu.memory_space<vmem>>, %arg3: memref<1x128xf32, #tpu.memory_space<vmem>>, %arg4: memref<16x128xf32, #tpu.memory_space<vmem>>) attributes {dimension_semantics = [#tpu.dimension_semantics<parallel>], iteration_bounds = array<i64: 1>, scalar_prefetch = 0 : i64, scratch_operands = 0 : i64, tpu.core_type = #tpu.core_type<tc>, window_params = [{transform_indices = @transform_0, window_bounds = array<i64: 16, 32>}, {pipeline_mode = #tpu.pipeline_mode<synchronous>, transform_indices = @transform_1, window_bounds = array<i64: 32, 128>}, {pipeline_mode = #tpu.pipeline_mode<synchronous>, transform_indices = @transform_2, window_bounds = array<i64: 1, 128>}, {transform_indices = @transform_3, window_bounds = array<i64: 16, 128>}]} {
    %c0 = arith.constant 0 : index
    %c0_0 = arith.constant 0 : index
    %0 = vector.load %arg1[%c0, %c0_0] : memref<16x32xf32, #tpu.memory_space<vmem>>, vector<16x32xf32>
    %1 = arith.truncf %0 : vector<16x32xf32> to vector<16x32xbf16>
    %c0_1 = arith.constant 0 : index
    %c0_2 = arith.constant 0 : index
    %2 = vector.load %arg2[%c0_1, %c0_2] : memref<32x128xbf16, #tpu.memory_space<vmem>>, vector<32x128xbf16>
    %cst = arith.constant dense<0.000000e+00> : vector<16x128xf32>
    %3 = tpu.matmul %1, %2, %cst {dimension_numbers = #tpu.dot_dimension_numbers<[1], [0], [0], [1], [0, 0, 1, 1], [], []>} : vector<16x32xbf16>, vector<32x128xbf16>, vector<16x128xf32> -> vector<16x128xf32>
    %c0_3 = arith.constant 0 : index
    %c0_4 = arith.constant 0 : index
    %4 = vector.load %arg3[%c0_3, %c0_4] : memref<1x128xf32, #tpu.memory_space<vmem>>, vector<1x128xf32>
    %5 = vector.broadcast %4 : vector<1x128xf32> to vector<16x128xf32>
    %6 = arith.addf %3, %5 : vector<16x128xf32>
    %cst_5 = arith.constant 5.000000e-01 : f32
    %7 = vector.broadcast %cst_5 : f32 to vector<16x128xf32>
    %8 = arith.mulf %7, %6 : vector<16x128xf32>
    %cst_6 = arith.constant 0.707106769 : f32
    %9 = vector.broadcast %cst_6 : f32 to vector<16x128xf32>
    %10 = arith.mulf %6, %9 : vector<16x128xf32>
    %11 = math.absf %10 : vector<16x128xf32>
    %cst_7 = arith.constant 0.327591091 : f32
    %12 = vector.broadcast %cst_7 : f32 to vector<16x128xf32>
    %13 = arith.mulf %12, %11 : vector<16x128xf32>
    %cst_8 = arith.constant 1.000000e+00 : f32
    %14 = vector.broadcast %cst_8 : f32 to vector<16x128xf32>
    %15 = arith.addf %14, %13 : vector<16x128xf32>
    %cst_9 = arith.constant 1.000000e+00 : f32
    %16 = vector.broadcast %cst_9 : f32 to vector<16x128xf32>
    %17 = arith.divf %16, %15 : vector<16x128xf32>
    %cst_10 = arith.constant 1.06140542 : f32
    %18 = vector.broadcast %cst_10 : f32 to vector<16x128xf32>
    %19 = arith.mulf %18, %17 : vector<16x128xf32>
    %cst_11 = arith.constant 1.45315206 : f32
    %20 = vector.broadcast %cst_11 : f32 to vector<16x128xf32>
    %21 = arith.subf %19, %20 : vector<16x128xf32>
    %22 = arith.mulf %21, %17 : vector<16x128xf32>
    %cst_12 = arith.constant 1.42141378 : f32
    %23 = vector.broadcast %cst_12 : f32 to vector<16x128xf32>
    %24 = arith.addf %22, %23 : vector<16x128xf32>
    %25 = arith.mulf %24, %17 : vector<16x128xf32>
    %cst_13 = arith.constant 0.284496725 : f32
    %26 = vector.broadcast %cst_13 : f32 to vector<16x128xf32>
    %27 = arith.subf %25, %26 : vector<16x128xf32>
    %28 = arith.mulf %27, %17 : vector<16x128xf32>
    %cst_14 = arith.constant 0.254829586 : f32
    %29 = vector.broadcast %cst_14 : f32 to vector<16x128xf32>
    %30 = arith.addf %28, %29 : vector<16x128xf32>
    %31 = arith.mulf %30, %17 : vector<16x128xf32>
    %cst_15 = arith.constant 0.000000e+00 : f32
    %32 = vector.broadcast %cst_15 : f32 to vector<16x128xf32>
    %33 = arith.subf %32, %11 : vector<16x128xf32>
    %34 = arith.mulf %33, %11 : vector<16x128xf32>
    %35 = math.exp %34 : vector<16x128xf32>
    %36 = arith.mulf %31, %35 : vector<16x128xf32>
    %cst_16 = arith.constant 1.000000e+00 : f32
    %37 = vector.broadcast %cst_16 : f32 to vector<16x128xf32>
    %38 = arith.subf %37, %36 : vector<16x128xf32>
    %cst_17 = arith.constant 0.000000e+00 : f32
    %39 = vector.broadcast %cst_17 : f32 to vector<16x128xf32>
    %40 = arith.cmpf olt, %10, %39 : vector<16x128xf32>
    %cst_18 = arith.constant 0.000000e+00 : f32
    %41 = vector.broadcast %cst_18 : f32 to vector<16x128xf32>
    %42 = arith.subf %41, %38 : vector<16x128xf32>
    %43 = arith.select %40, %42, %38 : vector<16x128xi1>, vector<16x128xf32>
    %cst_19 = arith.constant 1.000000e+00 : f32
    %44 = vector.broadcast %cst_19 : f32 to vector<16x128xf32>
    %45 = arith.addf %44, %43 : vector<16x128xf32>
    %46 = arith.mulf %8, %45 : vector<16x128xf32>
    %c0_20 = arith.constant 0 : index
    %c0_21 = arith.constant 0 : index
    %47 = vector.load %arg4[%c0_20, %c0_21] : memref<16x128xf32, #tpu.memory_space<vmem>>, vector<16x128xf32>
    tpu.vector_store %arg4[%c0_20, %c0_21], %46 {strides = array<i32>} : memref<16x128xf32, #tpu.memory_space<vmem>>, vector<16x128xf32>,
    return
  }
  func.func @transform_0(%arg0: i32) -> (i32, i32) {
    %c0_i32 = arith.constant 0 : i32
    %c0_i32_0 = arith.constant 0 : i32
    return %arg0, %c0_i32 : i32, i32
  }
  func.func @transform_1(%arg0: i32) -> (i32, i32) {
    %c0_i32 = arith.constant 0 : i32
    %c0_i32_0 = arith.constant 0 : i32
    %c0_i32_1 = arith.constant 0 : i32
    return %c0_i32, %c0_i32_0 : i32, i32
  }
  func.func @transform_2(%arg0: i32) -> (i32, i32) {
    %c0_i32 = arith.constant 0 : i32
    %c0_i32_0 = arith.constant 0 : i32
    %c0_i32_1 = arith.constant 0 : i32
    return %c0_i32, %c0_i32_0 : i32, i32
  }
  func.func @transform_3(%arg0: i32) -> (i32, i32) {
    %c0_i32 = arith.constant 0 : i32
    %c0_i32_0 = arith.constant 0 : i32
    return %arg0, %c0_i32 : i32, i32
  }
}

</mosaic_0001>

<llo_original>
// kernel: tpu_custom_call.1
$region0: #{tpu_custom_call.1}
  #allocation0 [shape = 'u32[]', space=smem, size = 0x4, offset = 0x4, fixed_abs, tag = 'smem constant byte address 0x4 - core index']
  #allocation1 [shape = 'u32[144,128]{1,0:T(1,128)}', space=vmem, size = 0x12000, scoped, tag = 'internal scratch']
  %s0 = inlined_call_operand.hbm [shape: f32[16,32], index: 0, kind: input, shape index: {}]
  %s1 = inlined_call_operand.hbm [shape: bf16[32,128], index: 1, kind: input, shape index: {}]
  %s2 = inlined_call_operand.vmem [shape: f32[1,128], index: 2, kind: input, shape index: {}]
  %s3 = inlined_call_operand.hbm [shape: f32[16,128], index: 3, kind: output, shape index: {}]
  %s4 = sld [smem:[#allocation0]]
  $region30: #{tpu_custom_call.1} parent=0
    _
  %s6 = ssub.s32 1, %s4
  %s7 = scalar_select 0, %s6, %s4
  $region1: #{tpu_custom_call.1} parent=0
    #allocation2 [shape = 'u8[8192]{0}', space=vmem, size = 0x2000, scoped, tag = 'input window, operand 0, single buffered']
    #allocation3 [shape = 's32[1]{0}', space=sflag, size = 0x4, scoped, tag = 'scoped memory for tpu_custom_call.1']
    #allocation4 [shape = 's32[1]{0}', space=sflag, size = 0x4, scoped, tag = 'scoped memory for tpu_custom_call.1']
    #allocation5 [shape = 'u8[8192]{0}', space=vmem, size = 0x2000, scoped, tag = 'input window, operand 1, single buffered']
    #allocation6 [shape = 's32[1]{0}', space=sflag, size = 0x4, scoped, tag = 'scoped memory for tpu_custom_call.1']
    #allocation7 [shape = 'u8[8192]{0}', space=vmem, size = 0x2000, scoped, tag = 'output window, operand 0, single buffered']
    %8 = vsyncpa [#allocation3], 0
    %9 = vsyncpa [#allocation6], 0
    %10 = vsyncpa [#allocation4], 0
    // Predicated region
    $region2: #{tpu_custom_call.1} parent=1 // pred_check
      _
    $region3: #{tpu_custom_call.1} parent=1 // pred_check_branch
      %12 = sbr.rel (0) target = $region5
    $region4: #{tpu_custom_call.1} parent=1 // pred_region
      %s14 = ssub.s32 256, 256
      %15 = vsyncadd [#allocation3], %s14
      %s16 = sshll.u32 [#allocation2], 4
      %s17 = int_to_ptr.vmem [resolvable:$true] %s16
      %22 = dma.hbm_to_vmem [thread:$0]  %s0, 256, %s17, [#allocation3], 128, 128, 8
    $region5: #{tpu_custom_call.1} parent=1 // pred_fallthru
      _
    // Predicated region
    $region6: #{tpu_custom_call.1} parent=1 // pred_check
      _
    $region7: #{tpu_custom_call.1} parent=1 // pred_check_branch
      %24 = sbr.rel (0) target = $region9
    $region8: #{tpu_custom_call.1} parent=1 // pred_region
      %s26 = ssub.s32 256, 256
      %27 = vsyncadd [#allocation6], %s26
      %s28 = sshll.u32 [#allocation5], 4
      %s29 = int_to_ptr.vmem [resolvable:$true] %s28
      %34 = dma.hbm_to_vmem [thread:$0]  %s1, 256, %s29, [#allocation6], 64, 64, 4
    $region9: #{tpu_custom_call.1} parent=1 // pred_fallthru
      _
    // Predicated region
    $region10: #{tpu_custom_call.1} parent=1 // pred_check
      _
    $region11: #{tpu_custom_call.1} parent=1 // pred_check_branch
      %36 = sbr.rel (0) target = $region13
    $region12: #{tpu_custom_call.1} parent=1 // pred_region
      _
    $region13: #{tpu_custom_call.1} parent=1 // pred_fallthru
      _
    // Predicated region
    $region14: #{tpu_custom_call.1} parent=1 // pred_check
      _
    $region15: #{tpu_custom_call.1} parent=1 // pred_check_branch
      %38 = sbr.rel (0) target = $region17
    $region16: #{tpu_custom_call.1} parent=1 // pred_region
      %39 = dma.done [#allocation3], 256
    $region17: #{tpu_custom_call.1} parent=1 // pred_fallthru
      _
    // Predicated region
    $region18: #{tpu_custom_call.1} parent=1 // pred_check
      _
    $region19: #{tpu_custom_call.1} parent=1 // pred_check_branch
      %41 = sbr.rel (0) target = $region21
    $region20: #{tpu_custom_call.1} parent=1 // pred_region
      %42 = dma.done [#allocation6], 256
    $region21: #{tpu_custom_call.1} parent=1 // pred_fallthru
      _
    %v44 = vld [vmem:[#allocation2] sm:$0xff]
    %v45 = vld [vmem:[#allocation2 + $0x8] sm:$0xff]
    %v46 = vpack.c.bf16 %v45, %v44
    %v47 = vld [vmem:[#allocation5] sm:$0xf]
    %v48 = vld [vmem:[#allocation5 + $0x4] sm:$0xf]
    %v49 = vld [vmem:[#allocation5 + $0x8] sm:$0xf]
    %v50 = vld [vmem:[#allocation5 + $0xc] sm:$0xf]
    %v51 = vld [vmem:[%s2] sm:$0x1]
    %v53 = vlaneseq
    %v54 = vshrl.u32 %v53, 7
    %v55 = vsub.s32 0, %v54
    %v56 = vrot.slane %v51, %v55
    %v62 = vunpack.c.l.b16 %v47
    %v63 = vunpack.c.l.b16 %v48
    %v64 = vunpack.c.l.b16 %v49
    %v65 = vunpack.c.l.b16 %v50
    %v66 = vpack.c.b16 %v63, %v62
    %v67 = vpack.c.b16 %v65, %v64
    %vm70 = vcmask 261120
    %v72 = vsel %vm70, %v46, 0
    %74 = vmatprep.subr.bf16.mxu0 0
    %75 = vmatpush1.bf16.msra.mxu0 0
    %76 = vmatprep.subr.bf16.mxu0 0
    %77 = vmatpush1.bf16.msra.mxu0 0
    %78 = vmatprep.subr.bf16.mxu0 0
    %79 = vmatpush1.bf16.msra.mxu0 0
    %80 = vmatprep.subr.bf16.mxu0 0
    %81 = vmatpush1.bf16.msra.mxu0 0
    %82 = vmatprep.subr.bf16.mxu0 0
    %83 = vmatpush1.bf16.msra.mxu0 0
    %84 = vmatprep.subr.bf16.mxu0 0
    %85 = vmatpush1.bf16.msra.mxu0 0
    %86 = vmatprep.subr.bf16.mxu0 0
    %87 = vmatpush1.bf16.msra.mxu0 %v67
    %88 = vmatprep.subr.bf16.mxu0 0
    %89 = vmatpush1.bf16.msra.mxu0 %v66
    %90 = vmatprep.subr.bf16.mxu0 0
    %91 = vmatpush2.bf16.msra.mxu0 0
    %92 = vmatprep.subr.bf16.mxu0 0
    %93 = vmatpush2.bf16.msra.mxu0 0
    %94 = vmatprep.subr.bf16.mxu0 0
    %95 = vmatpush2.bf16.msra.mxu0 0
    %96 = vmatprep.subr.bf16.mxu0 0
    %97 = vmatpush2.bf16.msra.mxu0 0
    %98 = vmatprep.subr.bf16.mxu0 0
    %99 = vmatpush2.bf16.msra.mxu0 0
    %100 = vmatprep.subr.bf16.mxu0 0
    %101 = vmatpush2.bf16.msra.mxu0 0
    %102 = vmatprep.subr.bf16.mxu0 0
    %103 = vmatpush2.bf16.msra.mxu0 0
    %104 = vmatprep.subr.bf16.mxu0 0
    %105 = vmatpush2.bf16.msra.mxu0 0
    %106 = vmatprep.mubr.bf16.mxu0 0
    %107 = vmatmul.mubr.bf16.gmra.mxu0 %v72
    %v108 = vpop.f32.mrf.mxu0
    %v109 = vadd.f32 %v56, %v108
    %v110 = vpop.f32.mrf.mxu0
    %v111 = vpop.f32.mrf.mxu0
    %v112 = vadd.f32 %v56, %v111
    %v113 = vpop.f32.mrf.mxu0
    %114 = vdwg.mxu0
    %v115 = vmul.f32 %v109, 0.5
    %v116 = vmul.f32 %v112, 0.5
    %v117 = vmul.f32 %v109, 0.70710677
    %v118 = vmul.f32 %v112, 0.70710677
    %v119 = vand.u32 2147483647, %v117
    %v120 = vand.u32 2147483647, %v118
    %v121 = vmul.f32 %v119, 0.3275911
    %v122 = vmul.f32 %v120, 0.3275911
    %v123 = vadd.f32 %v121, 1.0
    %v124 = vadd.f32 %v122, 1.0
    %v125 = vrcp.pop %v123
    %v126 = vmul.f32 1.0, %v125
    %v127 = vrcp.pop %v124
    %v128 = vmul.f32 1.0, %v127
    %v129 = vmul.f32 %v126, 1.0614054
    %v130 = vmul.f32 %v128, 1.0614054
    %v131 = vsub.f32 %v129, 1.4531521
    %v132 = vsub.f32 %v130, 1.4531521
    %v133 = vmul.f32 %v131, %v126
    %v134 = vmul.f32 %v132, %v128
    %v135 = vadd.f32 %v133, 1.4214138
    %v136 = vadd.f32 %v134, 1.4214138
    %v137 = vmul.f32 %v135, %v126
    %v138 = vmul.f32 %v136, %v128
    %v139 = vsub.f32 %v137, 0.28449672
    %v140 = vsub.f32 %v138, 0.28449672
    %v141 = vmul.f32 %v139, %v126
    %v142 = vmul.f32 %v140, %v128
    %v143 = vadd.f32 %v141, 0.2548296
    %v144 = vadd.f32 %v142, 0.2548296
    %v145 = vmul.f32 %v143, %v126
    %v146 = vmul.f32 %v144, %v128
    %v147 = vsub.f32 0.0, %v119
    %v148 = vsub.f32 0.0, %v120
    %v149 = vmul.f32 %v147, %v119
    %v150 = vmul.f32 %v148, %v120
    %v151 = vmul.f32 %v149, 1.442695
    %v152 = vpow.pop %v151
    %v153 = vmul.f32 %v150, 1.442695
    %v154 = vpow.pop %v153
    %v155 = vmul.f32 %v145, %v152
    %v156 = vmul.f32 %v146, %v154
    %v157 = vsub.f32 1.0, %v155
    %v158 = vsub.f32 1.0, %v156
    %vm159 = vcmp.lt.f32.partialorder %v117, 0.0
    %vm160 = vcmp.lt.f32.partialorder %v118, 0.0
    %v161 = vsub.f32 0.0, %v157
    %v162 = vsub.f32 0.0, %v158
    %v163 = vsel %vm159, %v161, %v157
    %v164 = vsel %vm160, %v162, %v158
    %v165 = vadd.f32 %v163, 1.0
    %v166 = vadd.f32 %v164, 1.0
    %v167 = vmul.f32 %v115, %v165
    %v168 = vmul.f32 %v116, %v166
    %169 = vst [vmem:[#allocation7] sm:$0xff] %v167
    %170 = vst [vmem:[#allocation7 + $0x8] sm:$0xff] %v168
    // Predicated region
    $region22: #{tpu_custom_call.1} parent=1 // pred_check
      _
    $region23: #{tpu_custom_call.1} parent=1 // pred_check_branch
      %172 = sbr.rel (0) target = $region25
    $region24: #{tpu_custom_call.1} parent=1 // pred_region
      %s174 = ssub.s32 256, 256
      %175 = vsyncadd [#allocation4], %s174
      %s176 = sshll.u32 [#allocation7], 4
      %s177 = int_to_ptr.vmem [resolvable:$true] %s176
      %182 = dma.vmem_to_hbm [thread:$0]  %s177, 256, %s3, [#allocation4], 128, 128, 8
    $region25: #{tpu_custom_call.1} parent=1 // pred_fallthru
      _
    // Predicated region
    $region26: #{tpu_custom_call.1} parent=1 // pred_check
      _
    $region27: #{tpu_custom_call.1} parent=1 // pred_check_branch
      %184 = sbr.rel (0) target = $region29
    $region28: #{tpu_custom_call.1} parent=1 // pred_region
      %185 = dma.done [#allocation4], 256
    $region29: #{tpu_custom_call.1} parent=1 // pred_fallthru
      _
    %186 = vsyncpa [#allocation3], 1
    %187 = vsyncpa [#allocation6], 1
    %188 = vsyncpa [#allocation4], 1

</llo_original>
